<compile_context>
chip_gen: v6e
topology: v6e:2x2x1
jax: 0.10.0
libtpu: 0.0.40
codegen_flags: <defaults>
</compile_context>

<pallas_src>
import jax
import jax.numpy as jnp
from jax.experimental import pallas as pl
from jax.experimental.pallas import tpu as pltpu


def _fused_ensemble_kernel(x_ref, w1_ref, b1_ref, w2_ref, b2_ref,
                           w3_ref, b3_ref, out_ref):
    """Whole ensemble in one step: three wide matmuls over packed weights.

    x_ref  : (tb, din)
    w1_ref : (din, E*H)     b1_ref : (1, E*H)
    w2_ref : (E*H, E*H)     b2_ref : (1, E*H)    (block-diagonal)
    w3_ref : (E*H, Nout)    b3_ref : (1, Nout)   (block-diagonal, lane-padded)
    out_ref: (tb, Nout)
    """
    x = x_ref[...]
    # Layer 1: Linear + SiLU (all members at once, columns are [e0|e1|...]).
    h1 = jnp.dot(x, w1_ref[...], preferred_element_type=jnp.float32) + b1_ref[...]
    h1 = h1 * jax.nn.sigmoid(h1)
    # Layer 2: block-diagonal Linear + SiLU (members stay independent).
    h2 = jnp.dot(h1, w2_ref[...], preferred_element_type=jnp.float32) + b2_ref[...]
    h2 = h2 * jax.nn.sigmoid(h2)
    # Layer 3: block-diagonal Linear (mean || logvar per member), lane-padded.
    out = jnp.dot(h2, w3_ref[...], preferred_element_type=jnp.float32) + b3_ref[...]
    out_ref[...] = out.astype(out_ref.dtype)


def _pack_params(params):
    """Wrapper-side packing of per-member weights into fused block matrices."""
    w1, b1, w2, b2, w3, b3 = params
    E, din, H = w1.shape
    dout = w3.shape[-1]
    EH = E * H
    Edo = E * dout
    n_out = ((Edo + 127) // 128) * 128   # lane-dense (unmasked stores)

    # Columns ordered member-major: col = e*H + h (matches b.reshape below).
    w1p = jnp.transpose(w1, (1, 0, 2)).reshape(din, EH)
    b1p = b1.reshape(1, EH)
    w2p = jax.scipy.linalg.block_diag(*[w2[e] for e in range(E)])      # (EH, EH)
    b2p = b2.reshape(1, EH)
    w3p = jax.scipy.linalg.block_diag(*[w3[e] for e in range(E)])      # (EH, Edo)
    b3p = b3.reshape(1, Edo)
    # Pad output columns up to a multiple of 128 (sliced off in the wrapper).
    w3p = jnp.pad(w3p, ((0, 0), (0, n_out - Edo)))
    b3p = jnp.pad(b3p, ((0, 0), (0, n_out - Edo)))
    return (w1p, b1p, w2p, b2p, w3p, b3p), (E, H, dout, n_out)


def ensemble_forward(x, params, state_dim, batch_tile=512):
    """Runs the whole ensemble fused into one (or few, if B is large) grid steps.

    Returns (means, logvars): lists of length E with arrays of shape
    (batch, state_dim + 1), matching the PyTorch module's forward().
    """
    (w1p, b1p, w2p, b2p, w3p, b3p), (E, H, dout, n_out) = _pack_params(params)
    B, din = x.shape
    EH = E * H

    # Batch tiling: whole batch for small inputs, fixed-size tiles otherwise.
    tb = B if B <= batch_tile else batch_tile
    Bp = pl.cdiv(B, tb) * tb
    if Bp != B:
        x = jnp.pad(x, ((0, Bp - B), (0, 0)))
    grid = (Bp // tb,)

    out = pl.pallas_call(
        _fused_ensemble_kernel,
        out_shape=jax.ShapeDtypeStruct((Bp, n_out), jnp.float32),
        grid_spec=pl.GridSpec(
            grid=grid,
            in_specs=[
                pl.BlockSpec((tb, din), lambda i: (i, 0)),      # x (streamed)
                pl.BlockSpec((din, EH), lambda i: (0, 0)),      # W1 (resident)
                pl.BlockSpec((1, EH), lambda i: (0, 0)),        # b1
                pl.BlockSpec((EH, EH), lambda i: (0, 0)),       # W2 (block-diag)
                pl.BlockSpec((1, EH), lambda i: (0, 0)),        # b2
                pl.BlockSpec((EH, n_out), lambda i: (0, 0)),    # W3 (block-diag)
                pl.BlockSpec((1, n_out), lambda i: (0, 0)),     # b3
            ],
            out_specs=pl.BlockSpec((tb, n_out), lambda i: (i, 0)),
        ),
        compiler_params=pltpu.CompilerParams(
            dimension_semantics=("parallel",)),
    )(x, w1p, b1p, w2p, b2p, w3p, b3p)

    out = out[:B]
    means = [out[:, e * dout: e * dout + state_dim + 1] for e in range(E)]
    logvars = [out[:, e * dout + state_dim + 1: (e + 1) * dout] for e in range(E)]
    return means, logvars


def init_ensemble_params(key, state_dim, action_dim, hidden_units, ensemble_size):
    """Deterministic init mirroring torch.nn.Linear default U[-1/sqrt(fan_in), 1/sqrt(fan_in)]."""
    din = state_dim + action_dim
    dout = (state_dim + 1) * 2
    ks = jax.random.split(key, 6)

    def uni(k, shape, fan_in):
        bound = 1.0 / jnp.sqrt(fan_in)
        return jax.random.uniform(k, shape, jnp.float32, -bound, bound)

    E, H = ensemble_size, hidden_units
    w1 = uni(ks[0], (E, din, H), din)
    b1 = uni(ks[1], (E, 1, H), din)
    w2 = uni(ks[2], (E, H, H), H)
    b2 = uni(ks[3], (E, 1, H), H)
    w3 = uni(ks[4], (E, H, dout), H)
    b3 = uni(ks[5], (E, 1, dout), H)
    return (w1, b1, w2, b2, w3, b3)


def reference_forward(x, params, state_dim):
    """Pure-JAX reference implementing the PyTorch forward exactly."""
    w1, b1, w2, b2, w3, b3 = params
    E = w1.shape[0]
    means, logvars = [], []
    for e in range(E):
        h1 = x @ w1[e] + b1[e]
        h1 = h1 * jax.nn.sigmoid(h1)          # SiLU
        h2 = h1 @ w2[e] + b2[e]
        h2 = h2 * jax.nn.sigmoid(h2)          # SiLU
        pred = h2 @ w3[e] + b3[e]
        means.append(pred[:, :state_dim + 1])
        logvars.append(pred[:, state_dim + 1:])
    return means, logvars


if __name__ == "__main__":
    state_dim = 4
    action_dim = 2
    hidden_units = 32     # E*H = 128: exactly one 128-wide MXU contraction
    ensemble_size = 4
    batch = 8

    key = jax.random.PRNGKey(0)
    k_params, k_x, k_x2 = jax.random.split(key, 3)
    params = init_ensemble_params(k_params, state_dim, action_dim,
                                  hidden_units, ensemble_size)
    x = jax.random.normal(k_x, (batch, state_dim + action_dim), jnp.float32)

    means, logvars = ensemble_forward(x, params, state_dim)
    jax.block_until_ready(means)
    jax.block_until_ready(logvars)

    # Correctness vs pure-JAX reference (small batch, single grid step).
    ref_means, ref_logvars = reference_forward(x, params, state_dim)
    for e in range(ensemble_size):
        assert means[e].shape == (batch, state_dim + 1)
        assert logvars[e].shape == (batch, state_dim + 1)
        assert jnp.allclose(means[e], ref_means[e], atol=2e-5, rtol=2e-5)
        assert jnp.allclose(logvars[e], ref_logvars[e], atol=2e-5, rtol=2e-5)

    # Also exercise the batch-tiling + padding path (grid > 1, ragged batch).
    big_batch = 300
    xb = jax.random.normal(k_x2, (big_batch, state_dim + action_dim), jnp.float32)
    means_b, logvars_b = ensemble_forward(xb, params, state_dim, batch_tile=128)
    jax.block_until_ready(means_b)
    ref_means_b, ref_logvars_b = reference_forward(xb, params, state_dim)
    for e in range(ensemble_size):
        assert means_b[e].shape == (big_batch, state_dim + 1)
        assert jnp.allclose(means_b[e], ref_means_b[e], atol=2e-5, rtol=2e-5)
        assert jnp.allclose(logvars_b[e], ref_logvars_b[e], atol=2e-5, rtol=2e-5)

    print("KERNEL_OK")
</pallas_src>

<mosaic_0001>
module attributes {stable_mosaic.version = 11 : i64} {
  func.func @_fused_ensemble_kernel(%arg0: i32, %arg1: memref<8x6xf32, #tpu.memory_space<vmem>>, %arg2: memref<6x128xf32, #tpu.memory_space<vmem>>, %arg3: memref<1x128xf32, #tpu.memory_space<vmem>>, %arg4: memref<128x128xf32, #tpu.memory_space<vmem>>, %arg5: memref<1x128xf32, #tpu.memory_space<vmem>>, %arg6: memref<128x128xf32, #tpu.memory_space<vmem>>, %arg7: memref<1x128xf32, #tpu.memory_space<vmem>>, %arg8: memref<8x128xf32, #tpu.memory_space<vmem>>) attributes {dimension_semantics = [#tpu.dimension_semantics<parallel>], iteration_bounds = array<i64: 1>, scalar_prefetch = 0 : i64, scratch_operands = 0 : i64, tpu.core_type = #tpu.core_type<tc>, window_params = [{transform_indices = @transform_0, window_bounds = array<i64: 8, 6>}, {pipeline_mode = #tpu.pipeline_mode<synchronous>, transform_indices = @transform_1, window_bounds = array<i64: 6, 128>}, {pipeline_mode = #tpu.pipeline_mode<synchronous>, transform_indices = @transform_2, window_bounds = array<i64: 1, 128>}, {pipeline_mode = #tpu.pipeline_mode<synchronous>, transform_indices = @transform_3, window_bounds = array<i64: 128, 128>}, {pipeline_mode = #tpu.pipeline_mode<synchronous>, transform_indices = @transform_4, window_bounds = array<i64: 1, 128>}, {pipeline_mode = #tpu.pipeline_mode<synchronous>, transform_indices = @transform_5, window_bounds = array<i64: 128, 128>}, {pipeline_mode = #tpu.pipeline_mode<synchronous>, transform_indices = @transform_6, window_bounds = array<i64: 1, 128>}, {transform_indices = @transform_7, window_bounds = array<i64: 8, 128>}]} {
    %c0 = arith.constant 0 : index
    %c0_0 = arith.constant 0 : index
    %0 = vector.load %arg1[%c0, %c0_0] : memref<8x6xf32, #tpu.memory_space<vmem>>, vector<8x6xf32>
    %c0_1 = arith.constant 0 : index
    %c0_2 = arith.constant 0 : index
    %1 = vector.load %arg2[%c0_1, %c0_2] : memref<6x128xf32, #tpu.memory_space<vmem>>, vector<6x128xf32>
    %cst = arith.constant dense<0.000000e+00> : vector<8x128xf32>
    %2 = tpu.matmul %0, %1, %cst {dimension_numbers = #tpu.dot_dimension_numbers<[1], [0], [0], [1], [0, 0, 1, 1], [], []>} : vector<8x6xf32>, vector<6x128xf32>, vector<8x128xf32> -> vector<8x128xf32>
    %c0_3 = arith.constant 0 : index
    %c0_4 = arith.constant 0 : index
    %3 = vector.load %arg3[%c0_3, %c0_4] : memref<1x128xf32, #tpu.memory_space<vmem>>, vector<1x128xf32>
    %4 = vector.broadcast %3 : vector<1x128xf32> to vector<8x128xf32>
    %5 = arith.addf %2, %4 : vector<8x128xf32>
    %6 = arith.negf %5 : vector<8x128xf32>
    %7 = math.exp %6 : vector<8x128xf32>
    %cst_5 = arith.constant 1.000000e+00 : f32
    %8 = vector.broadcast %cst_5 : f32 to vector<8x128xf32>
    %9 = arith.addf %8, %7 : vector<8x128xf32>
    %10 = arith.divf %8, %9 : vector<8x128xf32>
    %11 = arith.mulf %5, %10 : vector<8x128xf32>
    %c0_6 = arith.constant 0 : index
    %c0_7 = arith.constant 0 : index
    %12 = vector.load %arg4[%c0_6, %c0_7] : memref<128x128xf32, #tpu.memory_space<vmem>>, vector<128x128xf32>
    %cst_8 = arith.constant dense<0.000000e+00> : vector<8x128xf32>
    %13 = tpu.matmul %11, %12, %cst_8 {dimension_numbers = #tpu.dot_dimension_numbers<[1], [0], [0], [1], [0, 0, 1, 1], [], []>} : vector<8x128xf32>, vector<128x128xf32>, vector<8x128xf32> -> vector<8x128xf32>
    %c0_9 = arith.constant 0 : index
    %c0_10 = arith.constant 0 : index
    %14 = vector.load %arg5[%c0_9, %c0_10] : memref<1x128xf32, #tpu.memory_space<vmem>>, vector<1x128xf32>
    %15 = vector.broadcast %14 : vector<1x128xf32> to vector<8x128xf32>
    %16 = arith.addf %13, %15 : vector<8x128xf32>
    %17 = arith.negf %16 : vector<8x128xf32>
    %18 = math.exp %17 : vector<8x128xf32>
    %cst_11 = arith.constant 1.000000e+00 : f32
    %19 = vector.broadcast %cst_11 : f32 to vector<8x128xf32>
    %20 = arith.addf %19, %18 : vector<8x128xf32>
    %21 = arith.divf %19, %20 : vector<8x128xf32>
    %22 = arith.mulf %16, %21 : vector<8x128xf32>
    %c0_12 = arith.constant 0 : index
    %c0_13 = arith.constant 0 : index
    %23 = vector.load %arg6[%c0_12, %c0_13] : memref<128x128xf32, #tpu.memory_space<vmem>>, vector<128x128xf32>
    %cst_14 = arith.constant dense<0.000000e+00> : vector<8x128xf32>
    %24 = tpu.matmul %22, %23, %cst_14 {dimension_numbers = #tpu.dot_dimension_numbers<[1], [0], [0], [1], [0, 0, 1, 1], [], []>} : vector<8x128xf32>, vector<128x128xf32>, vector<8x128xf32> -> vector<8x128xf32>
    %c0_15 = arith.constant 0 : index
    %c0_16 = arith.constant 0 : index
    %25 = vector.load %arg7[%c0_15, %c0_16] : memref<1x128xf32, #tpu.memory_space<vmem>>, vector<1x128xf32>
    %26 = vector.broadcast %25 : vector<1x128xf32> to vector<8x128xf32>
    %27 = arith.addf %24, %26 : vector<8x128xf32>
    %c0_17 = arith.constant 0 : index
    %c0_18 = arith.constant 0 : index
    %28 = vector.load %arg8[%c0_17, %c0_18] : memref<8x128xf32, #tpu.memory_space<vmem>>, vector<8x128xf32>
    tpu.vector_store %arg8[%c0_17, %c0_18], %27 {strides = array<i32>} : memref<8x128xf32, #tpu.memory_space<vmem>>, vector<8x128xf32>,
    return
  }
  func.func @transform_0(%arg0: i32) -> (i32, i32) {
    %c0_i32 = arith.constant 0 : i32
    %c0_i32_0 = arith.constant 0 : i32
    return %arg0, %c0_i32 : i32, i32
  }
  func.func @transform_1(%arg0: i32) -> (i32, i32) {
    %c0_i32 = arith.constant 0 : i32
    %c0_i32_0 = arith.constant 0 : i32
    %c0_i32_1 = arith.constant 0 : i32
    return %c0_i32, %c0_i32_0 : i32, i32
  }
  func.func @transform_2(%arg0: i32) -> (i32, i32) {
    %c0_i32 = arith.constant 0 : i32
    %c0_i32_0 = arith.constant 0 : i32
    %c0_i32_1 = arith.constant 0 : i32
    return %c0_i32, %c0_i32_0 : i32, i32
  }
  func.func @transform_3(%arg0: i32) -> (i32, i32) {
    %c0_i32 = arith.constant 0 : i32
    %c0_i32_0 = arith.constant 0 : i32
    %c0_i32_1 = arith.constant 0 : i32
    return %c0_i32, %c0_i32_0 : i32, i32
  }
  func.func @transform_4(%arg0: i32) -> (i32, i32) {
    %c0_i32 = arith.constant 0 : i32
    %c0_i32_0 = arith.constant 0 : i32
    %c0_i32_1 = arith.constant 0 : i32
    return %c0_i32, %c0_i32_0 : i32, i32
  }
  func.func @transform_5(%arg0: i32) -> (i32, i32) {
    %c0_i32 = arith.constant 0 : i32
    %c0_i32_0 = arith.constant 0 : i32
    %c0_i32_1 = arith.constant 0 : i32
    return %c0_i32, %c0_i32_0 : i32, i32
  }
  func.func @transform_6(%arg0: i32) -> (i32, i32) {
    %c0_i32 = arith.constant 0 : i32
    %c0_i32_0 = arith.constant 0 : i32
    %c0_i32_1 = arith.constant 0 : i32
    return %c0_i32, %c0_i32_0 : i32, i32
  }
  func.func @transform_7(%arg0: i32) -> (i32, i32) {
    %c0_i32 = arith.constant 0 : i32
    %c0_i32_0 = arith.constant 0 : i32
    return %arg0, %c0_i32 : i32, i32
  }
}

</mosaic_0001>

<llo_original>
// kernel: tpu_custom_call.1
$region0: #{tpu_custom_call.1}
  #allocation0 [shape = 'u32[]', space=smem, size = 0x4, offset = 0x4, fixed_abs, tag = 'smem constant byte address 0x4 - core index']
  #allocation1 [shape = 'u32[144,128]{1,0:T(1,128)}', space=vmem, size = 0x12000, scoped, tag = 'internal scratch']
  %s0 = inlined_call_operand.hbm [shape: f32[8,6], index: 0, kind: input, shape index: {}]
  %s1 = inlined_call_operand.hbm [shape: f32[6,128], index: 1, kind: input, shape index: {}]
  %s2 = inlined_call_operand.vmem [shape: f32[1,128], index: 2, kind: input, shape index: {}]
  %s3 = inlined_call_operand.hbm [shape: f32[128,128], index: 3, kind: input, shape index: {}]
  %s4 = inlined_call_operand.vmem [shape: f32[1,128], index: 4, kind: input, shape index: {}]
  %s5 = inlined_call_operand.hbm [shape: f32[128,128], index: 5, kind: input, shape index: {}]
  %s6 = inlined_call_operand.vmem [shape: f32[1,128], index: 6, kind: input, shape index: {}]
  %s7 = inlined_call_operand.hbm [shape: f32[8,128], index: 7, kind: output, shape index: {}]
  %s8 = sld [smem:[#allocation0]]
  $region54: #{tpu_custom_call.1} parent=0
    _
  %s10 = ssub.s32 1, %s8
  %s11 = scalar_select 0, %s10, %s8
  $region1: #{tpu_custom_call.1} parent=0
    #allocation2 [shape = 'u8[4096]{0}', space=vmem, size = 0x1000, scoped, tag = 'input window, operand 0, single buffered']
    #allocation3 [shape = 's32[1]{0}', space=sflag, size = 0x4, scoped, tag = 'scoped memory for tpu_custom_call.1']
    #allocation4 [shape = 's32[1]{0}', space=sflag, size = 0x4, scoped, tag = 'scoped memory for tpu_custom_call.1']
    #allocation5 [shape = 'u8[4096]{0}', space=vmem, size = 0x1000, scoped, tag = 'input window, operand 1, single buffered']
    #allocation6 [shape = 's32[1]{0}', space=sflag, size = 0x4, scoped, tag = 'scoped memory for tpu_custom_call.1']
    #allocation7 [shape = 'u8[65536]{0}', space=vmem, size = 0x10000, scoped, tag = 'input window, operand 3, single buffered']
    #allocation8 [shape = 'u8[65536]{0}', space=vmem, size = 0x10000, scoped, tag = 'input window, operand 5, single buffered']
    #allocation9 [shape = 's32[1]{0}', space=sflag, size = 0x4, scoped, tag = 'scoped memory for tpu_custom_call.1']
    #allocation10 [shape = 'u8[4096]{0}', space=vmem, size = 0x1000, scoped, tag = 'output window, operand 0, single buffered']
    %12 = vsyncpa [#allocation3], 0
    %13 = vsyncpa [#allocation6], 0
    %14 = vsyncpa [#allocation9], 0
    %15 = vsyncpa [#allocation4], 0
    // Predicated region
    $region2: #{tpu_custom_call.1} parent=1 // pred_check
      _
    $region3: #{tpu_custom_call.1} parent=1 // pred_check_branch
      %17 = sbr.rel (0) target = $region5
    $region4: #{tpu_custom_call.1} parent=1 // pred_region
      %s19 = ssub.s32 128, 128
      %20 = vsyncadd [#allocation3], %s19
      %s22 = sshll.u32 [#allocation2], 4
      %s23 = int_to_ptr.vmem [resolvable:$true] %s22
      %25 = dma.hbm_to_vmem [thread:$0]  %s0, 128, %s23, [#allocation3]
    $region5: #{tpu_custom_call.1} parent=1 // pred_fallthru
      _
    // Predicated region
    $region6: #{tpu_custom_call.1} parent=1 // pred_check
      _
    $region7: #{tpu_custom_call.1} parent=1 // pred_check_branch
      %27 = sbr.rel (0) target = $region9
    $region8: #{tpu_custom_call.1} parent=1 // pred_region
      %s29 = ssub.s32 128, 128
      %30 = vsyncadd [#allocation6], %s29
      %s32 = sshll.u32 [#allocation5], 4
      %s33 = int_to_ptr.vmem [resolvable:$true] %s32
      %35 = dma.hbm_to_vmem [thread:$0]  %s1, 128, %s33, [#allocation6]
    $region9: #{tpu_custom_call.1} parent=1 // pred_fallthru
      _
    // Predicated region
    $region10: #{tpu_custom_call.1} parent=1 // pred_check
      _
    $region11: #{tpu_custom_call.1} parent=1 // pred_check_branch
      %37 = sbr.rel (0) target = $region13
    $region12: #{tpu_custom_call.1} parent=1 // pred_region
      _
    $region13: #{tpu_custom_call.1} parent=1 // pred_fallthru
      _
    // Predicated region
    $region14: #{tpu_custom_call.1} parent=1 // pred_check
      _
    $region15: #{tpu_custom_call.1} parent=1 // pred_check_branch
      %39 = sbr.rel (0) target = $region17
    $region16: #{tpu_custom_call.1} parent=1 // pred_region
      %s41 = ssub.s32 2048, 2048
      %42 = vsyncadd [#allocation6], %s41
      %s43 = sshll.u32 [#allocation7], 4
      %s44 = int_to_ptr.vmem [resolvable:$true] %s43
      %49 = dma.hbm_to_vmem [thread:$0]  %s3, 2048, %s44, [#allocation6], 128, 128, 8
    $region17: #{tpu_custom_call.1} parent=1 // pred_fallthru
      _
    // Predicated region
    $region18: #{tpu_custom_call.1} parent=1 // pred_check
      _
    $region19: #{tpu_custom_call.1} parent=1 // pred_check_branch
      %51 = sbr.rel (0) target = $region21
    $region20: #{tpu_custom_call.1} parent=1 // pred_region
      _
    $region21: #{tpu_custom_call.1} parent=1 // pred_fallthru
      _
    // Predicated region
    $region22: #{tpu_custom_call.1} parent=1 // pred_check
      _
    $region23: #{tpu_custom_call.1} parent=1 // pred_check_branch
      %53 = sbr.rel (0) target = $region25
    $region24: #{tpu_custom_call.1} parent=1 // pred_region
      %s55 = ssub.s32 2048, 2048
      %56 = vsyncadd [#allocation9], %s55
      %s57 = sshll.u32 [#allocation8], 4
      %s58 = int_to_ptr.vmem [resolvable:$true] %s57
      %63 = dma.hbm_to_vmem [thread:$0]  %s5, 2048, %s58, [#allocation9], 128, 128, 8
    $region25: #{tpu_custom_call.1} parent=1 // pred_fallthru
      _
    // Predicated region
    $region26: #{tpu_custom_call.1} parent=1 // pred_check
      _
    $region27: #{tpu_custom_call.1} parent=1 // pred_check_branch
      %65 = sbr.rel (0) target = $region29
    $region28: #{tpu_custom_call.1} parent=1 // pred_region
      _
    $region29: #{tpu_custom_call.1} parent=1 // pred_fallthru
      _
    // Predicated region
    $region30: #{tpu_custom_call.1} parent=1 // pred_check
      _
    $region31: #{tpu_custom_call.1} parent=1 // pred_check_branch
      %67 = sbr.rel (0) target = $region33
    $region32: #{tpu_custom_call.1} parent=1 // pred_region
      %68 = dma.done [#allocation3], 128
    $region33: #{tpu_custom_call.1} parent=1 // pred_fallthru
      _
    // Predicated region
    $region34: #{tpu_custom_call.1} parent=1 // pred_check
      _
    $region35: #{tpu_custom_call.1} parent=1 // pred_check_branch
      %70 = sbr.rel (0) target = $region37
    $region36: #{tpu_custom_call.1} parent=1 // pred_region
      %71 = dma.done [#allocation6], 128
    $region37: #{tpu_custom_call.1} parent=1 // pred_fallthru
      _
    // Predicated region
    $region38: #{tpu_custom_call.1} parent=1 // pred_check
      _
    $region39: #{tpu_custom_call.1} parent=1 // pred_check_branch
      %73 = sbr.rel (0) target = $region41
    $region40: #{tpu_custom_call.1} parent=1 // pred_region
      %74 = dma.done [#allocation6], 2048
    $region41: #{tpu_custom_call.1} parent=1 // pred_fallthru
      _
    // Predicated region
    $region42: #{tpu_custom_call.1} parent=1 // pred_check
      _
    $region43: #{tpu_custom_call.1} parent=1 // pred_check_branch
      %76 = sbr.rel (0) target = $region45
    $region44: #{tpu_custom_call.1} parent=1 // pred_region
      %77 = dma.done [#allocation9], 2048
    $region45: #{tpu_custom_call.1} parent=1 // pred_fallthru
      _
    %v78 = vld [vmem:[#allocation2] sm:$0xff]
    %v79 = vld [vmem:[#allocation5] sm:$0x3f]
    %v80 = vld [vmem:[%s2] sm:$0x1]
    %v82 = vlaneseq
    %v83 = vshrl.u32 %v82, 7
    %v84 = vsub.s32 0, %v83
    %v85 = vrot.slane %v80, %v84
    %vm87 = vcmask 48128
    %v89 = vsel %vm87, %v78, 0
    %vm91 = vcmask 1045504
    %v93 = vsel %vm91, %v79, 0
    %95 = vmatprep.subr.mxu0 0.0
    %96 = vmatpush1.msra.mxu0 0.0
    %97 = vmatprep.subr.mxu0 0.0
    %98 = vmatpush1.msra.mxu0 0.0
    %99 = vmatprep.subr.mxu0 0.0
    %100 = vmatpush1.msra.mxu0 0.0
    %101 = vmatprep.subr.mxu0 0.0
    %102 = vmatpush1.msra.mxu0 0.0
    %103 = vmatprep.subr.mxu0 0.0
    %104 = vmatpush1.msra.mxu0 0.0
    %105 = vmatprep.subr.mxu0 0.0
    %106 = vmatpush1.msra.mxu0 0.0
    %107 = vmatprep.subr.mxu0 0.0
    %108 = vmatpush1.msra.mxu0 0.0
    %109 = vmatprep.subr.mxu0 0.0
    %110 = vmatpush1.msra.mxu0 0.0
    %111 = vmatprep.subr.mxu0 0.0
    %112 = vmatpush1.msra.mxu0 0.0
    %113 = vmatprep.subr.mxu0 0.0
    %114 = vmatpush1.msra.mxu0 0.0
    %115 = vmatprep.subr.mxu0 0.0
    %116 = vmatpush1.msra.mxu0 0.0
    %117 = vmatprep.subr.mxu0 0.0
    %118 = vmatpush1.msra.mxu0 0.0
    %119 = vmatprep.subr.mxu0 0.0
    %120 = vmatpush1.msra.mxu0 0.0
    %121 = vmatprep.subr.mxu0 0.0
    %122 = vmatpush1.msra.mxu0 0.0
    %123 = vmatprep.subr.mxu0 0.0
    %124 = vmatpush1.msra.mxu0 0.0
    %125 = vmatprep.subr.mxu0 0.0
    %126 = vmatpush1.msra.mxu0 %v93
    %127 = vmatprep.subr.mxu0 0.0
    %128 = vmatpush2.msra.mxu0 0.0
    %129 = vmatprep.subr.mxu0 0.0
    %130 = vmatpush2.msra.mxu0 0.0
    %131 = vmatprep.subr.mxu0 0.0
    %132 = vmatpush2.msra.mxu0 0.0
    %133 = vmatprep.subr.mxu0 0.0
    %134 = vmatpush2.msra.mxu0 0.0
    %135 = vmatprep.subr.mxu0 0.0
    %136 = vmatpush2.msra.mxu0 0.0
    %137 = vmatprep.subr.mxu0 0.0
    %138 = vmatpush2.msra.mxu0 0.0
    %139 = vmatprep.subr.mxu0 0.0
    %140 = vmatpush2.msra.mxu0 0.0
    %141 = vmatprep.subr.mxu0 0.0
    %142 = vmatpush2.msra.mxu0 0.0
    %143 = vmatprep.subr.mxu0 0.0
    %144 = vmatpush2.msra.mxu0 0.0
    %145 = vmatprep.subr.mxu0 0.0
    %146 = vmatpush2.msra.mxu0 0.0
    %147 = vmatprep.subr.mxu0 0.0
    %148 = vmatpush2.msra.mxu0 0.0
    %149 = vmatprep.subr.mxu0 0.0
    %150 = vmatpush2.msra.mxu0 0.0
    %151 = vmatprep.subr.mxu0 0.0
    %152 = vmatpush2.msra.mxu0 0.0
    %153 = vmatprep.subr.mxu0 0.0
    %154 = vmatpush2.msra.mxu0 0.0
    %155 = vmatprep.subr.mxu0 0.0
    %156 = vmatpush2.msra.mxu0 0.0
    %157 = vmatprep.subr.mxu0 0.0
    %158 = vmatpush2.msra.mxu0 0.0
    %159 = vmatprep.mubr.f32.mxu0 0.0
    %160 = vmatmul.mubr.f32.gmra.mxu0 %v89
    %v161 = vpop.f32.mrf.mxu0
    %v162 = vadd.f32 %v85, %v161
    %v163 = vpop.f32.mrf.mxu0
    %164 = vdwg.mxu0
    %v165 = vxor.u32 %v162, 2147483648
    %v166 = vmul.f32 %v165, 1.442695
    %v167 = vpow.pop %v166
    %v168 = vadd.f32 %v167, 1.0
    %v169 = vrcp.pop %v168
    %v170 = vmul.f32 1.0, %v169
    %v171 = vmul.f32 %v162, %v170
    %v172 = vld [vmem:[#allocation7] sm:$0xff]
    %v173 = vld [vmem:[#allocation7 + $0x8] sm:$0xff]
    %v174 = vld [vmem:[#allocation7 + $0x10] sm:$0xff]
    %v175 = vld [vmem:[#allocation7 + $0x18] sm:$0xff]
    %v176 = vld [vmem:[#allocation7 + $0x20] sm:$0xff]
    %v177 = vld [vmem:[#allocation7 + $0x28] sm:$0xff]
    %v178 = vld [vmem:[#allocation7 + $0x30] sm:$0xff]
    %v179 = vld [vmem:[#allocation7 + $0x38] sm:$0xff]
    %v180 = vld [vmem:[#allocation7 + $0x40] sm:$0xff]
    %v181 = vld [vmem:[#allocation7 + $0x48] sm:$0xff]
    %v182 = vld [vmem:[#allocation7 + $0x50] sm:$0xff]
    %v183 = vld [vmem:[#allocation7 + $0x58] sm:$0xff]
    %v184 = vld [vmem:[#allocation7 + $0x60] sm:$0xff]
    %v185 = vld [vmem:[#allocation7 + $0x68] sm:$0xff]
    %v186 = vld [vmem:[#allocation7 + $0x70] sm:$0xff]
    %v187 = vld [vmem:[#allocation7 + $0x78] sm:$0xff]
    %v188 = vld [vmem:[%s4] sm:$0x1]
    %v190 = vlaneseq
    %v191 = vshrl.u32 %v190, 7
    %v192 = vsub.s32 0, %v191
    %v193 = vrot.slane %v188, %v192
    %195 = vmatprep.subr.mxu0 0.0
    %196 = vmatpush1.msra.mxu0 %v187
    %197 = vmatprep.subr.mxu0 0.0
    %198 = vmatpush1.msra.mxu0 %v186
    %199 = vmatprep.subr.mxu0 0.0
    %200 = vmatpush1.msra.mxu0 %v185
    %201 = vmatprep.subr.mxu0 0.0
    %202 = vmatpush1.msra.mxu0 %v184
    %203 = vmatprep.subr.mxu0 0.0
    %204 = vmatpush1.msra.mxu0 %v183
    %205 = vmatprep.subr.mxu0 0.0
    %206 = vmatpush1.msra.mxu0 %v182
    %207 = vmatprep.subr.mxu0 0.0
    %208 = vmatpush1.msra.mxu0 %v181
    %209 = vmatprep.subr.mxu0 0.0
    %210 = vmatpush1.msra.mxu0 %v180
    %211 = vmatprep.subr.mxu0 0.0
    %212 = vmatpush1.msra.mxu0 %v179
    %213 = vmatprep.subr.mxu0 0.0
    %214 = vmatpush1.msra.mxu0 %v178
    %215 = vmatprep.subr.mxu0 0.0
    %216 = vmatpush1.msra.mxu0 %v177
    %217 = vmatprep.subr.mxu0 0.0
    %218 = vmatpush1.msra.mxu0 %v176
    %219 = vmatprep.subr.mxu0 0.0
    %220 = vmatpush1.msra.mxu0 %v175
    %221 = vmatprep.subr.mxu0 0.0
    %222 = vmatpush1.msra.mxu0 %v174
    %223 = vmatprep.subr.mxu0 0.0
    %224 = vmatpush1.msra.mxu0 %v173
    %225 = vmatprep.subr.mxu0 0.0
    %226 = vmatpush1.msra.mxu0 %v172
    %227 = vmatprep.subr.mxu0 0.0
    %228 = vmatpush2.msra.mxu0 0.0
    %229 = vmatprep.subr.mxu0 0.0
    %230 = vmatpush2.msra.mxu0 0.0
    %231 = vmatprep.subr.mxu0 0.0
    %232 = vmatpush2.msra.mxu0 0.0
    %233 = vmatprep.subr.mxu0 0.0
    %234 = vmatpush2.msra.mxu0 0.0
    %235 = vmatprep.subr.mxu0 0.0
    %236 = vmatpush2.msra.mxu0 0.0
    %237 = vmatprep.subr.mxu0 0.0
    %238 = vmatpush2.msra.mxu0 0.0
    %239 = vmatprep.subr.mxu0 0.0
    %240 = vmatpush2.msra.mxu0 0.0
    %241 = vmatprep.subr.mxu0 0.0
    %242 = vmatpush2.msra.mxu0 0.0
    %243 = vmatprep.subr.mxu0 0.0
    %244 = vmatpush2.msra.mxu0 0.0
    %245 = vmatprep.subr.mxu0 0.0
    %246 = vmatpush2.msra.mxu0 0.0
    %247 = vmatprep.subr.mxu0 0.0
    %248 = vmatpush2.msra.mxu0 0.0
    %249 = vmatprep.subr.mxu0 0.0
    %250 = vmatpush2.msra.mxu0 0.0
    %251 = vmatprep.subr.mxu0 0.0
    %252 = vmatpush2.msra.mxu0 0.0
    %253 = vmatprep.subr.mxu0 0.0
    %254 = vmatpush2.msra.mxu0 0.0
    %255 = vmatprep.subr.mxu0 0.0
    %256 = vmatpush2.msra.mxu0 0.0
    %257 = vmatprep.subr.mxu0 0.0
    %258 = vmatpush2.msra.mxu0 0.0
    %259 = vmatprep.mubr.f32.mxu0 0.0
    %260 = vmatmul.mubr.f32.gmra.mxu0 %v171
    %v261 = vpop.f32.mrf.mxu0
    %v262 = vadd.f32 %v193, %v261
    %v263 = vpop.f32.mrf.mxu0
    %264 = vdwg.mxu0
    %v265 = vxor.u32 %v262, 2147483648
    %v266 = vmul.f32 %v265, 1.442695
    %v267 = vpow.pop %v266
    %v268 = vadd.f32 %v267, 1.0
    %v269 = vrcp.pop %v268
    %v270 = vmul.f32 1.0, %v269
    %v271 = vmul.f32 %v262, %v270
    %v272 = vld [vmem:[#allocation8] sm:$0xff]
    %v273 = vld [vmem:[#allocation8 + $0x8] sm:$0xff]
    %v274 = vld [vmem:[#allocation8 + $0x10] sm:$0xff]
    %v275 = vld [vmem:[#allocation8 + $0x18] sm:$0xff]
    %v276 = vld [vmem:[#allocation8 + $0x20] sm:$0xff]
    %v277 = vld [vmem:[#allocation8 + $0x28] sm:$0xff]
    %v278 = vld [vmem:[#allocation8 + $0x30] sm:$0xff]
    %v279 = vld [vmem:[#allocation8 + $0x38] sm:$0xff]
    %v280 = vld [vmem:[#allocation8 + $0x40] sm:$0xff]
    %v281 = vld [vmem:[#allocation8 + $0x48] sm:$0xff]
    %v282 = vld [vmem:[#allocation8 + $0x50] sm:$0xff]
    %v283 = vld [vmem:[#allocation8 + $0x58] sm:$0xff]
    %v284 = vld [vmem:[#allocation8 + $0x60] sm:$0xff]
    %v285 = vld [vmem:[#allocation8 + $0x68] sm:$0xff]
    %v286 = vld [vmem:[#allocation8 + $0x70] sm:$0xff]
    %v287 = vld [vmem:[#allocation8 + $0x78] sm:$0xff]
    %v288 = vld [vmem:[%s6] sm:$0x1]
    %v290 = vlaneseq
    %v291 = vshrl.u32 %v290, 7
    %v292 = vsub.s32 0, %v291
    %v293 = vrot.slane %v288, %v292
    %295 = vmatprep.subr.mxu0 0.0
    %296 = vmatpush1.msra.mxu0 %v287
    %297 = vmatprep.subr.mxu0 0.0
    %298 = vmatpush1.msra.mxu0 %v286
    %299 = vmatprep.subr.mxu0 0.0
    %300 = vmatpush1.msra.mxu0 %v285
    %301 = vmatprep.subr.mxu0 0.0
    %302 = vmatpush1.msra.mxu0 %v284
    %303 = vmatprep.subr.mxu0 0.0
    %304 = vmatpush1.msra.mxu0 %v283
    %305 = vmatprep.subr.mxu0 0.0
    %306 = vmatpush1.msra.mxu0 %v282
    %307 = vmatprep.subr.mxu0 0.0
    %308 = vmatpush1.msra.mxu0 %v281
    %309 = vmatprep.subr.mxu0 0.0
    %310 = vmatpush1.msra.mxu0 %v280
    %311 = vmatprep.subr.mxu0 0.0
    %312 = vmatpush1.msra.mxu0 %v279
    %313 = vmatprep.subr.mxu0 0.0
    %314 = vmatpush1.msra.mxu0 %v278
    %315 = vmatprep.subr.mxu0 0.0
    %316 = vmatpush1.msra.mxu0 %v277
    %317 = vmatprep.subr.mxu0 0.0
    %318 = vmatpush1.msra.mxu0 %v276
    %319 = vmatprep.subr.mxu0 0.0
    %320 = vmatpush1.msra.mxu0 %v275
    %321 = vmatprep.subr.mxu0 0.0
    %322 = vmatpush1.msra.mxu0 %v274
    %323 = vmatprep.subr.mxu0 0.0
    %324 = vmatpush1.msra.mxu0 %v273
    %325 = vmatprep.subr.mxu0 0.0
    %326 = vmatpush1.msra.mxu0 %v272
    %327 = vmatprep.subr.mxu0 0.0
    %328 = vmatpush2.msra.mxu0 0.0
    %329 = vmatprep.subr.mxu0 0.0
    %330 = vmatpush2.msra.mxu0 0.0
    %331 = vmatprep.subr.mxu0 0.0
    %332 = vmatpush2.msra.mxu0 0.0
    %333 = vmatprep.subr.mxu0 0.0
    %334 = vmatpush2.msra.mxu0 0.0
    %335 = vmatprep.subr.mxu0 0.0
    %336 = vmatpush2.msra.mxu0 0.0
    %337 = vmatprep.subr.mxu0 0.0
    %338 = vmatpush2.msra.mxu0 0.0
    %339 = vmatprep.subr.mxu0 0.0
    %340 = vmatpush2.msra.mxu0 0.0
    %341 = vmatprep.subr.mxu0 0.0
    %342 = vmatpush2.msra.mxu0 0.0
    %343 = vmatprep.subr.mxu0 0.0
    %344 = vmatpush2.msra.mxu0 0.0
    %345 = vmatprep.subr.mxu0 0.0
    %346 = vmatpush2.msra.mxu0 0.0
    %347 = vmatprep.subr.mxu0 0.0
    %348 = vmatpush2.msra.mxu0 0.0
    %349 = vmatprep.subr.mxu0 0.0
    %350 = vmatpush2.msra.mxu0 0.0
    %351 = vmatprep.subr.mxu0 0.0
    %352 = vmatpush2.msra.mxu0 0.0
    %353 = vmatprep.subr.mxu0 0.0
    %354 = vmatpush2.msra.mxu0 0.0
    %355 = vmatprep.subr.mxu0 0.0
    %356 = vmatpush2.msra.mxu0 0.0
    %357 = vmatprep.subr.mxu0 0.0
    %358 = vmatpush2.msra.mxu0 0.0
    %359 = vmatprep.mubr.f32.mxu0 0.0
    %360 = vmatmul.mubr.f32.gmra.mxu0 %v271
    %v361 = vpop.f32.mrf.mxu0
    %v362 = vadd.f32 %v293, %v361
    %v363 = vpop.f32.mrf.mxu0
    %364 = vdwg.mxu0
    %365 = vst [vmem:[#allocation10] sm:$0xff] %v362
    // Predicated region
    $region46: #{tpu_custom_call.1} parent=1 // pred_check
      _
    $region47: #{tpu_custom_call.1} parent=1 // pred_check_branch
      %367 = sbr.rel (0) target = $region49
    $region48: #{tpu_custom_call.1} parent=1 // pred_region
      %s369 = ssub.s32 128, 128
      %370 = vsyncadd [#allocation4], %s369
      %s372 = sshll.u32 [#allocation10], 4
      %s373 = int_to_ptr.vmem [resolvable:$true] %s372
      %375 = dma.vmem_to_hbm [thread:$0]  %s373, 128, %s7, [#allocation4]
    $region49: #{tpu_custom_call.1} parent=1 // pred_fallthru
      _
    // Predicated region
    $region50: #{tpu_custom_call.1} parent=1 // pred_check
      _
    $region51: #{tpu_custom_call.1} parent=1 // pred_check_branch
      %377 = sbr.rel (0) target = $region53
    $region52: #{tpu_custom_call.1} parent=1 // pred_region
      %378 = dma.done [#allocation4], 128
    $region53: #{tpu_custom_call.1} parent=1 // pred_fallthru
      _
    %379 = vsyncpa [#allocation3], 1
    %380 = vsyncpa [#allocation6], 1
    %381 = vsyncpa [#allocation9], 1
    %382 = vsyncpa [#allocation4], 1

</llo_original>
